<compile_context>
chip_gen: v7x
topology: tpu7x:2x2x1
jax: 0.10.0
libtpu: 0.0.40
codegen_flags: <defaults>
</compile_context>

<pallas_src>
import functools

import jax
import jax.numpy as jnp
from jax.experimental import pallas as pl
from jax.experimental.pallas import tpu as pltpu


def se_kernel(hw_real, use_mxu, w1_ref, w2t_ref, x_ref, o_ref):
    """Fused SE forward for one (NB, C, HWp) block of images.

    w1_ref  : VMEM (C_red, C)   — fc[0].weight, natural layout (C on lanes)
    w2t_ref : VMEM (C_red, C)   — fc[2].weight.T (C on lanes)
    x_ref   : VMEM (NB, C, HWp) — NB images, spatial flattened (lane-dense)
    o_ref   : VMEM (NB, C, HWp)
    """
    x = x_ref[...].astype(jnp.float32)                          # (NB, C, HWp)

    # Squeeze: global average pool over the spatial (lane) axis.  Padded lanes
    # are zero so the sum is exact; divide by the *real* H*W.
    mean = jnp.sum(x, axis=-1) * (1.0 / hw_real)                 # (NB, C)

    w1 = w1_ref[...]                                             # (C_red, C)
    w2t = w2t_ref[...]                                           # (C_red, C)

    if use_mxu:
        # Realistic SE channel counts (C >= 128): let the MXU do the MLP.
        h = jax.lax.dot_general(mean, w1, (((1,), (1,)), ((), ())),
                                preferred_element_type=jnp.float32)   # (NB, C_red)
        h = jnp.maximum(h, 0.0)
        s = jnp.dot(h, w2t, preferred_element_type=jnp.float32)        # (NB, C)
    else:
        # Tiny MLP (e.g. 32x2): broadcast-mul + reductions on the VPU/XLU; the
        # MXU would be <2% utilised.  C stays on the lane axis throughout.
        h = jnp.sum(mean[:, None, :] * w1[None, :, :], axis=-1)        # (NB, C_red)
        h = jnp.maximum(h, 0.0)
        s = jnp.sum(h[:, :, None] * w2t[None, :, :], axis=1)           # (NB, C)

    scale = jax.nn.sigmoid(s)                                           # (NB, C)

    # Excite: per-channel rescale, broadcast over the spatial lanes.
    o_ref[...] = (x * scale[:, :, None]).astype(o_ref.dtype)


def se_forward(x, w1, w2):
    """SE forward.

    x : (N, C, H, W)
    w1: (C_red, C)  — weight of nn.Linear(C, C//reduction, bias=False)
    w2: (C, C_red)  — weight of nn.Linear(C//reduction, C, bias=False)
    """
    N, C, H, W = x.shape
    C_red = w1.shape[0]
    HW = H * W
    itemsize = jnp.dtype(x.dtype).itemsize

    # Lane-dense layout: flatten spatial onto the last (128-lane) axis, padded
    # to a 128 multiple so output stores are full-width (no masked vst.msk).
    HWp = ((HW + 127) // 128) * 128
    x2 = x.reshape(N, C, HW)
    if HWp != HW:
        x2 = jnp.pad(x2, ((0, 0), (0, 0), (0, HWp - HW)))

    # Weights in lane-dense layout: w1 natural (C_red, C); w2 transposed once.
    w1_f = jnp.asarray(w1, jnp.float32)        # (C_red, C)
    w2t_f = jnp.asarray(w2, jnp.float32).T     # (C_red, C)

    # Pick NB images per grid step: ~2 MiB blocks (amortises ~0.35 us step
    # overhead, keeps 2x double-buffered in+out under the 16 MiB v5e scoped
    # default), and prefer >=2 steps once there is real work (v7x dual TC).
    image_bytes = C * HWp * itemsize
    target_block_bytes = 2 << 20
    nb = max(1, min(N, target_block_bytes // max(image_bytes, 1)))
    if N > 1 and N * image_bytes >= (4 << 20):
        nb = min(nb, (N + 1) // 2)
    while N % nb != 0:            # keep NB an exact divisor of N (no batch padding)
        nb -= 1
    grid = N // nb

    block_bytes = nb * C * HWp * itemsize
    w_bytes = 2 * C * C_red * 4
    vmem_limit = min(max(4 * block_bytes + 2 * w_bytes + (1 << 20), 4 << 20),
                     32 << 20)

    cost = pl.CostEstimate(
        flops=N * (2 * C * HW            # pool sum + rescale multiply
                   + 4 * C * C_red),     # the two tiny FC layers
        transcendentals=N * C,           # sigmoid
        bytes_accessed=2 * N * C * HW * itemsize + w_bytes,
    )

    kernel = functools.partial(se_kernel, float(HW), C >= 128)

    out = pl.pallas_call(
        kernel,
        out_shape=jax.ShapeDtypeStruct((N, C, HWp), x.dtype),
        grid=(grid,),
        in_specs=[
            pl.BlockSpec((C_red, C), lambda n: (0, 0)),         # w1   (resident)
            pl.BlockSpec((C_red, C), lambda n: (0, 0)),         # w2.T (resident)
            pl.BlockSpec((nb, C, HWp), lambda n: (n, 0, 0)),    # NB-image slab
        ],
        out_specs=pl.BlockSpec((nb, C, HWp), lambda n: (n, 0, 0)),
        compiler_params=pltpu.CompilerParams(
            dimension_semantics=("parallel",),
            vmem_limit_bytes=vmem_limit,
        ),
        cost_estimate=cost,
    )(w1_f, w2t_f, x2)

    if HWp != HW:
        out = out[:, :, :HW]
    return out.reshape(N, C, H, W)


if __name__ == "__main__":
    key = jax.random.PRNGKey(0)
    kx, k1, k2 = jax.random.split(key, 3)

    # Shapes consistent with SE(channel=32, reduction=16)  ->  C_red = 2.
    N, C, H, W = 2, 32, 16, 16
    reduction = 16
    C_red = C // reduction

    x = jax.random.normal(kx, (N, C, H, W), dtype=jnp.float32)

    # Deterministic Linear weights (kaiming-uniform-like range, no bias).
    b1 = 1.0 / (C ** 0.5)
    b2 = 1.0 / (C_red ** 0.5)
    w1 = jax.random.uniform(k1, (C_red, C), jnp.float32, -b1, b1)   # Linear(C, C_red)
    w2 = jax.random.uniform(k2, (C, C_red), jnp.float32, -b2, b2)   # Linear(C_red, C)

    out = jax.block_until_ready(se_forward(x, w1, w2))

    # Pure-JAX reference (mirrors the PyTorch forward exactly).
    y = jnp.mean(x, axis=(2, 3))                       # AdaptiveAvgPool2d(1).view(b, c)
    h = jnp.maximum(y @ w1.T, 0.0)                     # Linear + ReLU
    s = jax.nn.sigmoid(h @ w2.T)                       # Linear + Sigmoid
    ref = x * s[:, :, None, None]                      # x * y.expand_as(x)

    assert out.shape == (N, C, H, W)
    err = jnp.max(jnp.abs(out - ref))
    assert jnp.allclose(out, ref, atol=1e-5, rtol=1e-5), f"max abs err {err}"
    print("KERNEL_OK")
</pallas_src>

<mosaic_0001>
module attributes {stable_mosaic.version = 11 : i64} {
  func.func @se_kernel(%arg0: i32, %arg1: memref<2x32xf32, #tpu.memory_space<vmem>>, %arg2: memref<2x32xf32, #tpu.memory_space<vmem>>, %arg3: memref<2x32x256xf32, #tpu.memory_space<vmem>>, %arg4: memref<2x32x256xf32, #tpu.memory_space<vmem>>) attributes {dimension_semantics = [#tpu.dimension_semantics<parallel>], iteration_bounds = array<i64: 1>, scalar_prefetch = 0 : i64, scratch_operands = 0 : i64, tpu.core_type = #tpu.core_type<tc>, window_params = [{pipeline_mode = #tpu.pipeline_mode<synchronous>, transform_indices = @transform_0, window_bounds = array<i64: 2, 32>}, {pipeline_mode = #tpu.pipeline_mode<synchronous>, transform_indices = @transform_1, window_bounds = array<i64: 2, 32>}, {transform_indices = @transform_2, window_bounds = array<i64: 2, 32, 256>}, {transform_indices = @transform_3, window_bounds = array<i64: 2, 32, 256>}]} {
    %c0 = arith.constant 0 : index
    %c0_0 = arith.constant 0 : index
    %c0_1 = arith.constant 0 : index
    %0 = vector.load %arg3[%c0, %c0_0, %c0_1] : memref<2x32x256xf32, #tpu.memory_space<vmem>>, vector<2x32x256xf32>
    %cst = arith.constant dense<0.000000e+00> : vector<2x32xf32>
    %1 = vector.multi_reduction <add>, %0, %cst [2] : vector<2x32x256xf32> to vector<2x32xf32>
    %cst_2 = arith.constant 3.906250e-03 : f32
    %2 = vector.broadcast %cst_2 : f32 to vector<2x32xf32>
    %3 = arith.mulf %1, %2 : vector<2x32xf32>
    %c0_3 = arith.constant 0 : index
    %c0_4 = arith.constant 0 : index
    %4 = vector.load %arg1[%c0_3, %c0_4] : memref<2x32xf32, #tpu.memory_space<vmem>>, vector<2x32xf32>
    %c0_5 = arith.constant 0 : index
    %c0_6 = arith.constant 0 : index
    %5 = vector.load %arg2[%c0_5, %c0_6] : memref<2x32xf32, #tpu.memory_space<vmem>>, vector<2x32xf32>
    %6 = vector.shape_cast %3 : vector<2x32xf32> to vector<2x1x32xf32>
    %7 = vector.shape_cast %4 : vector<2x32xf32> to vector<1x2x32xf32>
    %8 = vector.broadcast %6 : vector<2x1x32xf32> to vector<2x2x32xf32>
    %9 = vector.broadcast %7 : vector<1x2x32xf32> to vector<2x2x32xf32>
    %10 = arith.mulf %8, %9 : vector<2x2x32xf32>
    %cst_7 = arith.constant dense<0.000000e+00> : vector<2x2xf32>
    %11 = vector.multi_reduction <add>, %10, %cst_7 [2] : vector<2x2x32xf32> to vector<2x2xf32>
    %cst_8 = arith.constant 0.000000e+00 : f32
    %12 = vector.broadcast %cst_8 : f32 to vector<2x2xf32>
    %13 = arith.maximumf %11, %12 : vector<2x2xf32>
    %14 = vector.shape_cast %13 : vector<2x2xf32> to vector<2x2x1xf32>
    %15 = vector.shape_cast %5 : vector<2x32xf32> to vector<1x2x32xf32>
    %16 = vector.broadcast %14 : vector<2x2x1xf32> to vector<2x2x32xf32>
    %17 = vector.broadcast %15 : vector<1x2x32xf32> to vector<2x2x32xf32>
    %18 = arith.mulf %16, %17 : vector<2x2x32xf32>
    %cst_9 = arith.constant dense<0.000000e+00> : vector<2x32xf32>
    %19 = vector.multi_reduction <add>, %18, %cst_9 [1] : vector<2x2x32xf32> to vector<2x32xf32>
    %20 = arith.negf %19 : vector<2x32xf32>
    %21 = math.exp %20 : vector<2x32xf32>
    %cst_10 = arith.constant 1.000000e+00 : f32
    %22 = vector.broadcast %cst_10 : f32 to vector<2x32xf32>
    %23 = arith.addf %22, %21 : vector<2x32xf32>
    %24 = arith.divf %22, %23 : vector<2x32xf32>
    %25 = vector.shape_cast %24 : vector<2x32xf32> to vector<2x32x1xf32>
    %26 = vector.broadcast %25 : vector<2x32x1xf32> to vector<2x32x256xf32>
    %27 = arith.mulf %0, %26 : vector<2x32x256xf32>
    %c0_11 = arith.constant 0 : index
    %c0_12 = arith.constant 0 : index
    %c0_13 = arith.constant 0 : index
    %28 = vector.load %arg4[%c0_11, %c0_12, %c0_13] : memref<2x32x256xf32, #tpu.memory_space<vmem>>, vector<2x32x256xf32>
    tpu.vector_store %arg4[%c0_11, %c0_12, %c0_13], %27 {strides = array<i32>} : memref<2x32x256xf32, #tpu.memory_space<vmem>>, vector<2x32x256xf32>,
    return
  }
  func.func @transform_0(%arg0: i32) -> (i32, i32) {
    %c0_i32 = arith.constant 0 : i32
    %c0_i32_0 = arith.constant 0 : i32
    %c0_i32_1 = arith.constant 0 : i32
    return %c0_i32, %c0_i32_0 : i32, i32
  }
  func.func @transform_1(%arg0: i32) -> (i32, i32) {
    %c0_i32 = arith.constant 0 : i32
    %c0_i32_0 = arith.constant 0 : i32
    %c0_i32_1 = arith.constant 0 : i32
    return %c0_i32, %c0_i32_0 : i32, i32
  }
  func.func @transform_2(%arg0: i32) -> (i32, i32, i32) {
    %c0_i32 = arith.constant 0 : i32
    %c0_i32_0 = arith.constant 0 : i32
    %c0_i32_1 = arith.constant 0 : i32
    return %arg0, %c0_i32, %c0_i32_0 : i32, i32, i32
  }
  func.func @transform_3(%arg0: i32) -> (i32, i32, i32) {
    %c0_i32 = arith.constant 0 : i32
    %c0_i32_0 = arith.constant 0 : i32
    %c0_i32_1 = arith.constant 0 : i32
    return %arg0, %c0_i32, %c0_i32_0 : i32, i32, i32
  }
}

</mosaic_0001>

<llo_original>
// kernel: tpu_custom_call.1
$region0: #{tpu_custom_call.1}
  #allocation0 [shape = 'u32[]', space=smem, size = 0x4, offset = 0x4, fixed_abs, tag = 'smem constant byte address 0x4 - core index']
  #allocation1 [shape = 'u32[144,128]{1,0:T(1,128)}', space=vmem, size = 0x12000, scoped, tag = 'internal scratch']
  %s0 = inlined_call_operand.hbm [shape: f32[2,32], index: 0, kind: input, shape index: {}]
  %s1 = inlined_call_operand.vmem [shape: f32[2,32], index: 1, kind: input, shape index: {}]
  %s2 = inlined_call_operand.hbm [shape: f32[2,32,256], index: 2, kind: input, shape index: {}]
  %s3 = inlined_call_operand.hbm [shape: f32[2,32,256], index: 3, kind: output, shape index: {}]
  %s4 = sld [smem:[#allocation0]]
  $region30: #{tpu_custom_call.1} parent=0
    _
  %s6 = ssub.s32 1, %s4
  %s7 = scalar_select 0, %s6, %s4
  $region1: #{tpu_custom_call.1} parent=0
    #allocation2 [shape = 'u8[1024]{0}', space=vmem, size = 0x400, scoped, tag = 'input window, operand 0, single buffered']
    #allocation3 [shape = 's32[1]{0}', space=sflag, size = 0x4, scoped, tag = 'scoped memory for tpu_custom_call.1']
    #allocation4 [shape = 's32[1]{0}', space=sflag, size = 0x4, scoped, tag = 'scoped memory for tpu_custom_call.1']
    #allocation5 [shape = 'u8[65536]{0}', space=vmem, size = 0x10000, scoped, tag = 'input window, operand 2, single buffered']
    #allocation6 [shape = 's32[1]{0}', space=sflag, size = 0x4, scoped, tag = 'scoped memory for tpu_custom_call.1']
    #allocation7 [shape = 'u8[65536]{0}', space=vmem, size = 0x10000, scoped, tag = 'output window, operand 0, single buffered']
    %8 = vsyncpa [#allocation3], 0
    %9 = vsyncpa [#allocation6], 0
    %10 = vsyncpa [#allocation4], 0
    // Predicated region
    $region2: #{tpu_custom_call.1} parent=1 // pred_check
      _
    $region3: #{tpu_custom_call.1} parent=1 // pred_check_branch
      %12 = sbr.rel (0) target = $region5
    $region4: #{tpu_custom_call.1} parent=1 // pred_region
      %s14 = ssub.s32 32, 32
      %15 = vsyncadd [#allocation3], %s14
      %s17 = sshll.u32 [#allocation2], 4
      %s18 = int_to_ptr.vmem [resolvable:$true] %s17
      %20 = dma.hbm_to_vmem [thread:$0]  %s0, 32, %s18, [#allocation3]
    $region5: #{tpu_custom_call.1} parent=1 // pred_fallthru
      _
    // Predicated region
    $region6: #{tpu_custom_call.1} parent=1 // pred_check
      _
    $region7: #{tpu_custom_call.1} parent=1 // pred_check_branch
      %22 = sbr.rel (0) target = $region9
    $region8: #{tpu_custom_call.1} parent=1 // pred_region
      _
    $region9: #{tpu_custom_call.1} parent=1 // pred_fallthru
      _
    // Predicated region
    $region10: #{tpu_custom_call.1} parent=1 // pred_check
      _
    $region11: #{tpu_custom_call.1} parent=1 // pred_check_branch
      %24 = sbr.rel (0) target = $region13
    $region12: #{tpu_custom_call.1} parent=1 // pred_region
      %s26 = ssub.s32 2048, 2048
      %27 = vsyncadd [#allocation6], %s26
      %s28 = sshll.u32 [#allocation5], 4
      %s29 = int_to_ptr.vmem [resolvable:$true] %s28
      %34 = dma.hbm_to_vmem [thread:$0]  %s2, 2048, %s29, [#allocation6], 256, 256, 16
    $region13: #{tpu_custom_call.1} parent=1 // pred_fallthru
      _
    // Predicated region
    $region14: #{tpu_custom_call.1} parent=1 // pred_check
      _
    $region15: #{tpu_custom_call.1} parent=1 // pred_check_branch
      %36 = sbr.rel (0) target = $region17
    $region16: #{tpu_custom_call.1} parent=1 // pred_region
      %37 = dma.done [#allocation3], 32
    $region17: #{tpu_custom_call.1} parent=1 // pred_fallthru
      _
    // Predicated region
    $region18: #{tpu_custom_call.1} parent=1 // pred_check
      _
    $region19: #{tpu_custom_call.1} parent=1 // pred_check_branch
      %39 = sbr.rel (0) target = $region21
    $region20: #{tpu_custom_call.1} parent=1 // pred_region
      %40 = dma.done [#allocation6], 2048
    $region21: #{tpu_custom_call.1} parent=1 // pred_fallthru
      _
    %v41 = vld [vmem:[#allocation5] sm:$0xff]
    %v42 = vld [vmem:[#allocation5 + $0x8] sm:$0xff]
    %v43 = vld [vmem:[#allocation5 + $0x10] sm:$0xff]
    %v44 = vld [vmem:[#allocation5 + $0x18] sm:$0xff]
    %v45 = vld [vmem:[#allocation5 + $0x20] sm:$0xff]
    %v46 = vld [vmem:[#allocation5 + $0x28] sm:$0xff]
    %v47 = vld [vmem:[#allocation5 + $0x30] sm:$0xff]
    %v48 = vld [vmem:[#allocation5 + $0x38] sm:$0xff]
    %v49 = vld [vmem:[#allocation5 + $0x40] sm:$0xff]
    %v50 = vld [vmem:[#allocation5 + $0x48] sm:$0xff]
    %v51 = vld [vmem:[#allocation5 + $0x50] sm:$0xff]
    %v52 = vld [vmem:[#allocation5 + $0x58] sm:$0xff]
    %v53 = vld [vmem:[#allocation5 + $0x60] sm:$0xff]
    %v54 = vld [vmem:[#allocation5 + $0x68] sm:$0xff]
    %v55 = vld [vmem:[#allocation5 + $0x70] sm:$0xff]
    %v56 = vld [vmem:[#allocation5 + $0x78] sm:$0xff]
    %v57 = vadd.f32 %v41, %v42
    %58 = vadd.xlane.f32.xlu0 %v57
    %v59 = vpop.xlane.xlu0 %58
    %v60 = vadd.f32 %v43, %v44
    %61 = vadd.xlane.f32.xlu0 %v60
    %v62 = vpop.xlane.xlu0 %61
    %v63 = vadd.f32 %v45, %v46
    %64 = vadd.xlane.f32.xlu0 %v63
    %v65 = vpop.xlane.xlu0 %64
    %v66 = vadd.f32 %v47, %v48
    %67 = vadd.xlane.f32.xlu0 %v66
    %v68 = vpop.xlane.xlu0 %67
    %v69 = vadd.f32 %v49, %v50
    %70 = vadd.xlane.f32.xlu0 %v69
    %v71 = vpop.xlane.xlu0 %70
    %v72 = vadd.f32 %v51, %v52
    %73 = vadd.xlane.f32.xlu0 %v72
    %v74 = vpop.xlane.xlu0 %73
    %v75 = vadd.f32 %v53, %v54
    %76 = vadd.xlane.f32.xlu0 %v75
    %v77 = vpop.xlane.xlu0 %76
    %v78 = vadd.f32 %v55, %v56
    %79 = vadd.xlane.f32.xlu0 %v78
    %v80 = vpop.xlane.xlu0 %79
    %v81 = vmul.f32 %v59, 0.00390625
    %v82 = vmul.f32 %v62, 0.00390625
    %v83 = vmul.f32 %v65, 0.00390625
    %v84 = vmul.f32 %v68, 0.00390625
    %v85 = vmul.f32 %v71, 0.00390625
    %v86 = vmul.f32 %v74, 0.00390625
    %v87 = vmul.f32 %v77, 0.00390625
    %v88 = vmul.f32 %v80, 0.00390625
    %v89 = vld [vmem:[#allocation2] sm:$0x3]
    %v90 = vld [vmem:[%s1] sm:$0x3]
    %v92 = vlaneseq
    %v93 = vshrl.u32 %v92, 7
    %v94 = vsub.s32 0, %v93
    %v95 = vrot.slane %v89, %v94
    %97 = vbcast.lane.b32.xlu0 %v95, 256
    %v98 = vpop.permute.xlu0 %97
    %s100 = sor.u32 256, 8
    %101 = vbcast.lane.b32.xlu0 %v95, %s100
    %v102 = vpop.permute.xlu0 %101
    %s104 = sor.u32 256, 16
    %105 = vbcast.lane.b32.xlu0 %v95, %s104
    %v106 = vpop.permute.xlu0 %105
    %s108 = sor.u32 256, 24
    %109 = vbcast.lane.b32.xlu0 %v95, %s108
    %v110 = vpop.permute.xlu0 %109
    %v111 = vlaneseq
    %v112 = vshrl.u32 %v111, 7
    %v113 = vsub.s32 1, %v112
    %v114 = vrot.slane %v89, %v113
    %116 = vbcast.lane.b32.xlu0 %v114, 256
    %v117 = vpop.permute.xlu0 %116
    %s119 = sor.u32 256, 8
    %120 = vbcast.lane.b32.xlu0 %v114, %s119
    %v121 = vpop.permute.xlu0 %120
    %s123 = sor.u32 256, 16
    %124 = vbcast.lane.b32.xlu0 %v114, %s123
    %v125 = vpop.permute.xlu0 %124
    %s127 = sor.u32 256, 24
    %128 = vbcast.lane.b32.xlu0 %v114, %s127
    %v129 = vpop.permute.xlu0 %128
    %v138 = vmul.f32 %v81, %v98
    %v139 = vmul.f32 %v82, %v102
    %v140 = vmul.f32 %v83, %v106
    %v141 = vmul.f32 %v84, %v110
    %v142 = vmul.f32 %v81, %v117
    %v143 = vmul.f32 %v82, %v121
    %v144 = vmul.f32 %v83, %v125
    %v145 = vmul.f32 %v84, %v129
    %v146 = vmul.f32 %v85, %v98
    %v147 = vmul.f32 %v86, %v102
    %v148 = vmul.f32 %v87, %v106
    %v149 = vmul.f32 %v88, %v110
    %v150 = vmul.f32 %v85, %v117
    %v151 = vmul.f32 %v86, %v121
    %v152 = vmul.f32 %v87, %v125
    %v153 = vmul.f32 %v88, %v129
    %170 = vset.pattern.permute.xlu0 0
    %171 = vperm.xlu0 %170, %v138
    %v172 = vpop.permute.xlu0 %171
    %173 = vset.pattern.permute.xlu0 0
    %174 = vperm.xlu0 %173, %v139
    %v175 = vpop.permute.xlu0 %174
    %176 = vset.pattern.permute.xlu0 0
    %177 = vperm.xlu0 %176, %v140
    %v178 = vpop.permute.xlu0 %177
    %179 = vset.pattern.permute.xlu0 0
    %180 = vperm.xlu0 %179, %v141
    %v181 = vpop.permute.xlu0 %180
    %182 = vset.pattern.permute.xlu0 0
    %183 = vperm.xlu0 %182, %v142
    %v184 = vpop.permute.xlu0 %183
    %185 = vset.pattern.permute.xlu0 0
    %186 = vperm.xlu0 %185, %v143
    %v187 = vpop.permute.xlu0 %186
    %188 = vset.pattern.permute.xlu0 0
    %189 = vperm.xlu0 %188, %v144
    %v190 = vpop.permute.xlu0 %189
    %191 = vset.pattern.permute.xlu0 0
    %192 = vperm.xlu0 %191, %v145
    %v193 = vpop.permute.xlu0 %192
    %194 = vset.pattern.permute.xlu0 0
    %195 = vperm.xlu0 %194, %v146
    %v196 = vpop.permute.xlu0 %195
    %197 = vset.pattern.permute.xlu0 0
    %198 = vperm.xlu0 %197, %v147
    %v199 = vpop.permute.xlu0 %198
    %200 = vset.pattern.permute.xlu0 0
    %201 = vperm.xlu0 %200, %v148
    %v202 = vpop.permute.xlu0 %201
    %203 = vset.pattern.permute.xlu0 0
    %204 = vperm.xlu0 %203, %v149
    %v205 = vpop.permute.xlu0 %204
    %206 = vset.pattern.permute.xlu0 0
    %207 = vperm.xlu0 %206, %v150
    %v208 = vpop.permute.xlu0 %207
    %209 = vset.pattern.permute.xlu0 0
    %210 = vperm.xlu0 %209, %v151
    %v211 = vpop.permute.xlu0 %210
    %212 = vset.pattern.permute.xlu0 0
    %213 = vperm.xlu0 %212, %v152
    %v214 = vpop.permute.xlu0 %213
    %215 = vset.pattern.permute.xlu0 0
    %216 = vperm.xlu0 %215, %v153
    %v217 = vpop.permute.xlu0 %216
    %v218 = vlaneseq
    %v219 = vand.u32 %v218, 127
    %v220 = vlaneseq
    %v221 = vshrl.u32 %v220, 7
    %v222 = vsub.s32 %v219, %v221
    %v223 = vrot.slane %v172, %v222
    %v224 = vadd.s32 %v219, 4294967288
    %v225 = vlaneseq
    %v226 = vshrl.u32 %v225, 7
    %v227 = vsub.s32 %v224, %v226
    %v228 = vrot.slane %v175, %v227
    %vm229 = vcmask 130112
    %v230 = vsel %vm229, %v228, %v223
    %v231 = vadd.s32 %v219, 4294967280
    %v232 = vlaneseq
    %v233 = vshrl.u32 %v232, 7
    %v234 = vsub.s32 %v231, %v233
    %v235 = vrot.slane %v178, %v234
    %vm236 = vcmask 195712
    %v237 = vsel %vm236, %v235, %v230
    %v238 = vadd.s32 %v219, 4294967272
    %v239 = vlaneseq
    %v240 = vshrl.u32 %v239, 7
    %v241 = vsub.s32 %v238, %v240
    %v242 = vrot.slane %v181, %v241
    %vm243 = vcmask 261312
    %v244 = vsel %vm243, %v242, %v237
    %v245 = vlaneseq
    %v246 = vshrl.u32 %v245, 7
    %v247 = vsub.s32 %v219, %v246
    %v248 = vrot.slane %v184, %v247
    %v249 = vlaneseq
    %v250 = vshrl.u32 %v249, 7
    %v251 = vsub.s32 %v224, %v250
    %v252 = vrot.slane %v187, %v251
    %v253 = vsel %vm229, %v252, %v248
    %v254 = vlaneseq
    %v255 = vshrl.u32 %v254, 7
    %v256 = vsub.s32 %v231, %v255
    %v257 = vrot.slane %v190, %v256
    %v258 = vsel %vm236, %v257, %v253
    %v259 = vlaneseq
    %v260 = vshrl.u32 %v259, 7
    %v261 = vsub.s32 %v238, %v260
    %v262 = vrot.slane %v193, %v261
    %v263 = vsel %vm243, %v262, %v258
    %v264 = vlaneseq
    %v265 = vshrl.u32 %v264, 7
    %v266 = vsub.s32 %v219, %v265
    %v267 = vrot.slane %v196, %v266
    %v268 = vlaneseq
    %v269 = vshrl.u32 %v268, 7
    %v270 = vsub.s32 %v224, %v269
    %v271 = vrot.slane %v199, %v270
    %v272 = vsel %vm229, %v271, %v267
    %v273 = vlaneseq
    %v274 = vshrl.u32 %v273, 7
    %v275 = vsub.s32 %v231, %v274
    %v276 = vrot.slane %v202, %v275
    %v277 = vsel %vm236, %v276, %v272
    %v278 = vlaneseq
    %v279 = vshrl.u32 %v278, 7
    %v280 = vsub.s32 %v238, %v279
    %v281 = vrot.slane %v205, %v280
    %v282 = vsel %vm243, %v281, %v277
    %v283 = vlaneseq
    %v284 = vshrl.u32 %v283, 7
    %v285 = vsub.s32 %v219, %v284
    %v286 = vrot.slane %v208, %v285
    %v287 = vlaneseq
    %v288 = vshrl.u32 %v287, 7
    %v289 = vsub.s32 %v224, %v288
    %v290 = vrot.slane %v211, %v289
    %v291 = vsel %vm229, %v290, %v286
    %v292 = vlaneseq
    %v293 = vshrl.u32 %v292, 7
    %v294 = vsub.s32 %v231, %v293
    %v295 = vrot.slane %v214, %v294
    %v296 = vsel %vm236, %v295, %v291
    %v297 = vlaneseq
    %v298 = vshrl.u32 %v297, 7
    %v299 = vsub.s32 %v238, %v298
    %v300 = vrot.slane %v217, %v299
    %v301 = vsel %vm243, %v300, %v296
    %vm302 = vcmask 1041409
    %v303 = vsel %vm302, %v263, %v244
    %v304 = vsel %vm302, %v301, %v282
    %vm307 = vcmask 254976
    %v308 = vsel %vm307, %v303, 0.0
    %309 = vadd.xlane.f32.xlu0 %v308
    %v310 = vpop.xlane.xlu0 %309
    %v311 = vsel %vm307, %v304, 0.0
    %312 = vadd.xlane.f32.xlu0 %v311
    %v313 = vpop.xlane.xlu0 %312
    %v314 = vmax.f32 %v310, 0.0
    %v315 = vmax.f32 %v313, 0.0
    %v316 = vmul.f32 %v314, %v90
    %v317 = vmul.f32 %v315, %v90
    %v318 = vsel %vm307, %v316, 0.0
    %v319 = vrot.slane %v318, 4
    %v320 = vadd.f32 %v318, %v319
    %v321 = vrot.slane %v320, 2
    %v322 = vadd.f32 %v320, %v321
    %v323 = vrot.slane %v322, 1
    %v324 = vadd.f32 %v322, %v323
    %v325 = vsel %vm307, %v317, 0.0
    %v326 = vrot.slane %v325, 4
    %v327 = vadd.f32 %v325, %v326
    %v328 = vrot.slane %v327, 2
    %v329 = vadd.f32 %v327, %v328
    %v330 = vrot.slane %v329, 1
    %v331 = vadd.f32 %v329, %v330
    %v332 = vxor.u32 %v324, 2147483648
    %v333 = vxor.u32 %v331, 2147483648
    %v334 = vmul.f32 %v332, 1.442695
    %v335 = vpow.pop %v334
    %v336 = vmul.f32 %v333, 1.442695
    %v337 = vpow.pop %v336
    %v338 = vadd.f32 %v335, 1.0
    %v339 = vadd.f32 %v337, 1.0
    %v340 = vrcp.pop %v338
    %v341 = vmul.f32 1.0, %v340
    %v342 = vrcp.pop %v339
    %v343 = vmul.f32 1.0, %v342
    %345 = vbcast.lane.b32.xlu0 %v341, 256
    %v346 = vpop.permute.xlu0 %345
    %s348 = sor.u32 256, 8
    %349 = vbcast.lane.b32.xlu0 %v341, %s348
    %v350 = vpop.permute.xlu0 %349
    %s352 = sor.u32 256, 16
    %353 = vbcast.lane.b32.xlu0 %v341, %s352
    %v354 = vpop.permute.xlu0 %353
    %s356 = sor.u32 256, 24
    %357 = vbcast.lane.b32.xlu0 %v341, %s356
    %v358 = vpop.permute.xlu0 %357
    %360 = vbcast.lane.b32.xlu0 %v343, 256
    %v361 = vpop.permute.xlu0 %360
    %s363 = sor.u32 256, 8
    %364 = vbcast.lane.b32.xlu0 %v343, %s363
    %v365 = vpop.permute.xlu0 %364
    %s367 = sor.u32 256, 16
    %368 = vbcast.lane.b32.xlu0 %v343, %s367
    %v369 = vpop.permute.xlu0 %368
    %s371 = sor.u32 256, 24
    %372 = vbcast.lane.b32.xlu0 %v343, %s371
    %v373 = vpop.permute.xlu0 %372
    %v374 = vmul.f32 %v41, %v346
    %v375 = vmul.f32 %v42, %v346
    %v376 = vmul.f32 %v43, %v350
    %v377 = vmul.f32 %v44, %v350
    %v378 = vmul.f32 %v45, %v354
    %v379 = vmul.f32 %v46, %v354
    %v380 = vmul.f32 %v47, %v358
    %v381 = vmul.f32 %v48, %v358
    %v382 = vmul.f32 %v49, %v361
    %v383 = vmul.f32 %v50, %v361
    %v384 = vmul.f32 %v51, %v365
    %v385 = vmul.f32 %v52, %v365
    %v386 = vmul.f32 %v53, %v369
    %v387 = vmul.f32 %v54, %v369
    %v388 = vmul.f32 %v55, %v373
    %v389 = vmul.f32 %v56, %v373
    %390 = vst [vmem:[#allocation7] sm:$0xff] %v374
    %391 = vst [vmem:[#allocation7 + $0x8] sm:$0xff] %v375
    %392 = vst [vmem:[#allocation7 + $0x10] sm:$0xff] %v376
    %393 = vst [vmem:[#allocation7 + $0x18] sm:$0xff] %v377
    %394 = vst [vmem:[#allocation7 + $0x20] sm:$0xff] %v378
    %395 = vst [vmem:[#allocation7 + $0x28] sm:$0xff] %v379
    %396 = vst [vmem:[#allocation7 + $0x30] sm:$0xff] %v380
    %397 = vst [vmem:[#allocation7 + $0x38] sm:$0xff] %v381
    %398 = vst [vmem:[#allocation7 + $0x40] sm:$0xff] %v382
    %399 = vst [vmem:[#allocation7 + $0x48] sm:$0xff] %v383
    %400 = vst [vmem:[#allocation7 + $0x50] sm:$0xff] %v384
    %401 = vst [vmem:[#allocation7 + $0x58] sm:$0xff] %v385
    %402 = vst [vmem:[#allocation7 + $0x60] sm:$0xff] %v386
    %403 = vst [vmem:[#allocation7 + $0x68] sm:$0xff] %v387
    %404 = vst [vmem:[#allocation7 + $0x70] sm:$0xff] %v388
    %405 = vst [vmem:[#allocation7 + $0x78] sm:$0xff] %v389
    // Predicated region
    $region22: #{tpu_custom_call.1} parent=1 // pred_check
      _
    $region23: #{tpu_custom_call.1} parent=1 // pred_check_branch
      %407 = sbr.rel (0) target = $region25
    $region24: #{tpu_custom_call.1} parent=1 // pred_region
      %s409 = ssub.s32 2048, 2048
      %410 = vsyncadd [#allocation4], %s409
      %s411 = sshll.u32 [#allocation7], 4
      %s412 = int_to_ptr.vmem [resolvable:$true] %s411
      %417 = dma.vmem_to_hbm [thread:$0]  %s412, 2048, %s3, [#allocation4], 256, 256, 16
    $region25: #{tpu_custom_call.1} parent=1 // pred_fallthru
      _
    // Predicated region
    $region26: #{tpu_custom_call.1} parent=1 // pred_check
      _
    $region27: #{tpu_custom_call.1} parent=1 // pred_check_branch
      %419 = sbr.rel (0) target = $region29
    $region28: #{tpu_custom_call.1} parent=1 // pred_region
      %420 = dma.done [#allocation4], 2048
    $region29: #{tpu_custom_call.1} parent=1 // pred_fallthru
      _
    %421 = vsyncpa [#allocation3], 1
    %422 = vsyncpa [#allocation6], 1
    %423 = vsyncpa [#allocation4], 1

</llo_original>
